<compile_context>
chip_gen: v5e
topology: v5e:2x2
jax: 0.10.0
libtpu: 0.0.40
codegen_flags: <defaults>
</compile_context>

<pallas_src>
import functools

import jax
import jax.numpy as jnp
from jax.experimental import pallas as pl
from jax.experimental.pallas import tpu as pltpu

NEG = -1.0e30  # finite stand-in for "-inf / inactive site"


def _ds(start, size, stride):
    """pl.ds with the subsample stride folded in (contiguous when stride==1)."""
    return pl.ds(start, size) if stride == 1 else pl.ds(start, size, stride)


def _chip_has_two_tensorcores():
    """v7x has 2 TensorCores per chip; v5e / v6e have 1."""
    try:
        kind = jax.devices()[0].device_kind.lower()
    except Exception:
        return False
    return ("v7" in kind) or ("7x" in kind)


def _fused_sparse_maxpool_kernel(x_ref, o_ref, padh_ref, padw_ref, *,
                                 layer_shapes, C, k, s, p, d):
    """All pooling layers + epilogue for one block of batch elements.

    x_ref:  [Bb, H, W, C1]  (C1 = C+1: features + active-mask channel, NEG at
            inactive sites).
    o_ref:  [Bb, Hf, Wf, C] final dense activations (0 at inactive sites).
    padh_ref / padw_ref: NEG-padded VMEM scratch for the H-pass / W-pass.
    """
    Bb = x_ref.shape[0]
    C1 = C + 1
    cur = x_ref[...]                                        # [Bb, Hin, Win, C1]

    for (Hin, Win, Ho, Wo) in layer_shapes:
        Hp = Hin + 2 * p
        Wp = Win + 2 * p

        # ---- pass 1: pool along H (a leading dim of the 4D scratch) -------
        if p > 0:
            negh = jnp.full((Bb, p, Win, C1), NEG, jnp.float32)
            padh_ref[:, 0:p, 0:Win, :] = negh
            padh_ref[:, p + Hin:Hp, 0:Win, :] = negh
        padh_ref[:, p:p + Hin, 0:Win, :] = cur

        t = None
        for kh in range(k):
            win = padh_ref[:, _ds(kh * d, Ho, s), 0:Win, :]  # [Bb, Ho, Win, C1]
            t = win if t is None else jnp.maximum(t, win)

        # ---- pass 2: pool along W (the sublane dim of the 4D scratch) -----
        if p > 0:
            negw = jnp.full((Bb, Ho, p, C1), NEG, jnp.float32)
            padw_ref[:, 0:Ho, 0:p, :] = negw
            padw_ref[:, 0:Ho, p + Win:Wp, :] = negw
        padw_ref[:, 0:Ho, p:p + Win, :] = t

        z = None
        for kw in range(k):
            win = padw_ref[:, 0:Ho, _ds(kw * d, Wo, s), :]   # [Bb, Ho, Wo, C1]
            z = win if z is None else jnp.maximum(z, win)

        cur = z                                              # next layer input

    # ---- fused epilogue: zero inactive output sites, drop the mask channel --
    feat = cur[..., 0:C]
    active = cur[..., C:C + 1] > 0.0
    o_ref[...] = jnp.where(active, feat, 0.0).astype(o_ref.dtype)


def fused_sparse_maxpool(dense_nhwc, num_layers, num_channels, kernel_size,
                         stride, padding, dilation):
    """dense_nhwc: [B, H, W, C+1] f32 (NEG at inactive sites, mask channel last).

    Returns [B, Hf, Wf, C] f32 after `num_layers` sparse max-pools, zeros at
    inactive final output sites."""
    B, H, W, C1 = dense_nhwc.shape
    C = num_channels
    assert C1 == C + 1
    k, s, p, d = kernel_size, stride, padding, dilation

    layer_shapes = []
    Hc, Wc = H, W
    for _ in range(num_layers):
        Ho = (Hc + 2 * p - d * (k - 1) - 1) // s + 1
        Wo = (Wc + 2 * p - d * (k - 1) - 1) // s + 1
        layer_shapes.append((Hc, Wc, Ho, Wo))
        Hc, Wc = Ho, Wo
    Hf, Wf = Hc, Wc

    # One VMEM scratch per pooling direction, sized for the largest layer.
    max_hp = max(hi + 2 * p for hi, _, _, _ in layer_shapes)
    max_wi = max(wi for _, wi, _, _ in layer_shapes)
    max_ho = max(ho for _, _, ho, _ in layer_shapes)
    max_wp = max(wi + 2 * p for _, wi, _, _ in layer_shapes)

    # Grid choice: 2-TC chips (v7x) get one batch element per core ("parallel");
    # single-TC v5e/v6e process the whole batch in one grid step (no per-step
    # pipeline overhead).
    if _chip_has_two_tensorcores() and B > 1:
        Bb, grid, sem = 1, (B,), ("parallel",)
    else:
        Bb, grid, sem = B, (1,), ("arbitrary",)

    kern = functools.partial(_fused_sparse_maxpool_kernel,
                             layer_shapes=tuple(layer_shapes),
                             C=C, k=k, s=s, p=p, d=d)

    return pl.pallas_call(
        kern,
        out_shape=jax.ShapeDtypeStruct((B, Hf, Wf, C), jnp.float32),
        grid_spec=pltpu.PrefetchScalarGridSpec(
            num_scalar_prefetch=0,
            grid=grid,
            in_specs=[pl.BlockSpec((Bb, H, W, C1), lambda b: (b, 0, 0, 0))],
            out_specs=pl.BlockSpec((Bb, Hf, Wf, C), lambda b: (b, 0, 0, 0)),
            scratch_shapes=[
                pltpu.VMEM((Bb, max_hp, max_wi, C1), jnp.float32),  # H-pass pad
                pltpu.VMEM((Bb, max_ho, max_wp, C1), jnp.float32),  # W-pass pad
            ]),
        compiler_params=pltpu.CompilerParams(dimension_semantics=sem),
    )(dense_nhwc)


class SparseMaxPool2dPallas:
    """Pallas equivalent of SparseMaxPool2dTestTorch (returns dense NCHW output)."""

    def __init__(self, num_layers, ndim, shape, kernel_size, stride, padding,
                 dilation, algo=None):
        assert ndim == 2, "only 2D pooling is implemented"
        # TODO(synk): spconv `algo` only selects an indice-generation algorithm
        # (no numerical effect) -> ignored.
        self.num_layers = num_layers
        self.shape = tuple(shape)
        self.k, self.s, self.p, self.d = kernel_size, stride, padding, dilation

    def __call__(self, features, coors, batch_size):
        # features: [N, C] float, coors: [N, 3] int (batch, y, x)
        N, C = features.shape
        H, W = self.shape
        coors = coors.astype(jnp.int32)

        # Densify (channels-last, single scatter): NEG at inactive sites plus an
        # "active" mask channel (1.0 active / NEG inactive).
        # NOTE: duplicate coordinates are last-writer-wins (spconv dedups).
        # TODO(synk): for large sparse H*W, fuse this scatter into the kernel
        # (coors via scalar prefetch in SMEM) to avoid one HBM round trip.
        feats_aug = jnp.concatenate(
            [features.astype(jnp.float32), jnp.ones((N, 1), jnp.float32)], axis=1)
        dense = jnp.full((batch_size, H, W, C + 1), NEG, jnp.float32)
        b, y, x = coors[:, 0], coors[:, 1], coors[:, 2]
        dense = dense.at[b, y, x].set(feats_aug)

        # All layers + padding + epilogue fused in one kernel.
        pooled = fused_sparse_maxpool(dense, self.num_layers, C,
                                      self.k, self.s, self.p, self.d)
        # [B, Hf, Wf, C] -> NCHW, matching SparseConvTensor.dense()
        return jnp.transpose(pooled, (0, 3, 1, 2))


def _reference_forward(features, coors, batch_size, shape, num_layers, k, s, p, d):
    """Pure-JAX reference of the same sparse max-pool semantics (NCHW)."""
    C = features.shape[1]
    H, W = shape
    coors = coors.astype(jnp.int32)
    dense = jnp.full((batch_size, C + 1, H, W), NEG, dtype=jnp.float32)
    b, y, x = coors[:, 0], coors[:, 1], coors[:, 2]
    dense = dense.at[b, :C, y, x].set(features.astype(jnp.float32))
    dense = dense.at[b, C, y, x].set(1.0)

    cur = dense
    for _ in range(num_layers):
        B_, C1, Hc, Wc = cur.shape
        Ho = (Hc + 2 * p - d * (k - 1) - 1) // s + 1
        Wo = (Wc + 2 * p - d * (k - 1) - 1) // s + 1
        xp = jnp.pad(cur, ((0, 0), (0, 0), (p, p), (p, p)), constant_values=NEG)
        out = jnp.full((B_, C1, Ho, Wo), NEG, dtype=jnp.float32)
        for kh in range(k):
            for kw in range(k):
                sl = xp[:, :,
                        kh * d: kh * d + (Ho - 1) * s + 1: s,
                        kw * d: kw * d + (Wo - 1) * s + 1: s]
                out = jnp.maximum(out, sl)
        cur = out
    feat = cur[:, :C]
    mask = cur[:, C:] > 0.0
    return jnp.where(mask, feat, 0.0)


if __name__ == "__main__":
    # Small deterministic example consistent with the module's forward signature.
    B, C, H, W = 2, 4, 16, 16
    N_PER_BATCH = 24
    num_layers, ksize, stride, padding, dilation = 2, 3, 2, 1, 1

    key = jax.random.PRNGKey(0)
    kf, *kc = jax.random.split(key, 1 + B)

    # unique active coordinates per batch element
    coors_list = []
    for bi in range(B):
        flat = jax.random.permutation(kc[bi], H * W)[:N_PER_BATCH]
        ys, xs = flat // W, flat % W
        bs = jnp.full((N_PER_BATCH,), bi, dtype=jnp.int32)
        coors_list.append(jnp.stack([bs, ys.astype(jnp.int32),
                                     xs.astype(jnp.int32)], axis=1))
    coors = jnp.concatenate(coors_list, axis=0)                 # [B*N_PER_BATCH, 3]
    features = jax.random.normal(kf, (B * N_PER_BATCH, C), jnp.float32)

    model = SparseMaxPool2dPallas(num_layers=num_layers, ndim=2, shape=(H, W),
                                  kernel_size=ksize, stride=stride,
                                  padding=padding, dilation=dilation, algo=None)

    out = model(features, coors, B)
    out = jax.block_until_ready(out)
    assert out.shape == (B, C, 4, 4), out.shape  # 16 -> 8 -> 4 with these params

    ref = _reference_forward(features, coors, B, (H, W), num_layers,
                             ksize, stride, padding, dilation)
    ref = jax.block_until_ready(ref)
    assert bool(jnp.array_equal(out, ref)), "kernel output mismatch vs JAX reference"

    print("KERNEL_OK")
</pallas_src>

<mosaic_0001>
module attributes {stable_mosaic.version = 11 : i64} {
  func.func @_fused_sparse_maxpool_kernel(%arg0: i32, %arg1: memref<2x16x16x5xf32, #tpu.memory_space<vmem>>, %arg2: memref<2x4x4x4xf32, #tpu.memory_space<vmem>>, %arg3: memref<2x18x16x5xf32, #tpu.memory_space<vmem>>, %arg4: memref<2x8x18x5xf32, #tpu.memory_space<vmem>>) attributes {dimension_semantics = [#tpu.dimension_semantics<arbitrary>], iteration_bounds = array<i64: 1>, scalar_prefetch = 0 : i64, scratch_operands = 2 : i64, tpu.core_type = #tpu.core_type<tc>, window_params = [{transform_indices = @transform_0, window_bounds = array<i64: 2, 16, 16, 5>}, {transform_indices = @transform_1, window_bounds = array<i64: 2, 4, 4, 4>}]} {
    %c0 = arith.constant 0 : index
    %c0_0 = arith.constant 0 : index
    %c0_1 = arith.constant 0 : index
    %c0_2 = arith.constant 0 : index
    %0 = vector.load %arg1[%c0, %c0_0, %c0_1, %c0_2] : memref<2x16x16x5xf32, #tpu.memory_space<vmem>>, vector<2x16x16x5xf32>
    %cst = arith.constant -1.000000e+30 : f32
    %1 = vector.broadcast %cst : f32 to vector<2x1x16x5xf32>
    %c0_3 = arith.constant 0 : index
    %c0_4 = arith.constant 0 : index
    %c0_5 = arith.constant 0 : index
    %c0_6 = arith.constant 0 : index
    %2 = vector.load %arg3[%c0_3, %c0_4, %c0_5, %c0_6] : memref<2x18x16x5xf32, #tpu.memory_space<vmem>>, vector<2x1x16x5xf32>
    tpu.vector_store %arg3[%c0_3, %c0_4, %c0_5, %c0_6], %1 {strides = array<i32>} : memref<2x18x16x5xf32, #tpu.memory_space<vmem>>, vector<2x1x16x5xf32>,
    %c0_7 = arith.constant 0 : index
    %c17 = arith.constant 17 : index
    %c0_8 = arith.constant 0 : index
    %c0_9 = arith.constant 0 : index
    %3 = vector.load %arg3[%c0_7, %c17, %c0_8, %c0_9] : memref<2x18x16x5xf32, #tpu.memory_space<vmem>>, vector<2x1x16x5xf32>
    tpu.vector_store %arg3[%c0_7, %c17, %c0_8, %c0_9], %1 {strides = array<i32>} : memref<2x18x16x5xf32, #tpu.memory_space<vmem>>, vector<2x1x16x5xf32>,
    %c0_10 = arith.constant 0 : index
    %c1 = arith.constant 1 : index
    %c0_11 = arith.constant 0 : index
    %c0_12 = arith.constant 0 : index
    %4 = vector.load %arg3[%c0_10, %c1, %c0_11, %c0_12] : memref<2x18x16x5xf32, #tpu.memory_space<vmem>>, vector<2x16x16x5xf32>
    tpu.vector_store %arg3[%c0_10, %c1, %c0_11, %c0_12], %0 {strides = array<i32>} : memref<2x18x16x5xf32, #tpu.memory_space<vmem>>, vector<2x16x16x5xf32>,
    %c0_13 = arith.constant 0 : index
    %c0_14 = arith.constant 0 : index
    %c0_15 = arith.constant 0 : index
    %c0_16 = arith.constant 0 : index
    %5 = tpu.strided_load %arg3[%c0_13, %c0_14, %c0_15, %c0_16] {strides = array<i32: 1, 2, 1, 1>} : memref<2x18x16x5xf32, #tpu.memory_space<vmem>>, vector<2x8x16x5xf32>
    %c0_17 = arith.constant 0 : index
    %c1_18 = arith.constant 1 : index
    %c0_19 = arith.constant 0 : index
    %c0_20 = arith.constant 0 : index
    %6 = tpu.strided_load %arg3[%c0_17, %c1_18, %c0_19, %c0_20] {strides = array<i32: 1, 2, 1, 1>} : memref<2x18x16x5xf32, #tpu.memory_space<vmem>>, vector<2x8x16x5xf32>
    %7 = arith.maximumf %5, %6 : vector<2x8x16x5xf32>
    %c0_21 = arith.constant 0 : index
    %c2 = arith.constant 2 : index
    %c0_22 = arith.constant 0 : index
    %c0_23 = arith.constant 0 : index
    %8 = tpu.strided_load %arg3[%c0_21, %c2, %c0_22, %c0_23] {strides = array<i32: 1, 2, 1, 1>} : memref<2x18x16x5xf32, #tpu.memory_space<vmem>>, vector<2x8x16x5xf32>
    %9 = arith.maximumf %7, %8 : vector<2x8x16x5xf32>
    %cst_24 = arith.constant -1.000000e+30 : f32
    %10 = vector.broadcast %cst_24 : f32 to vector<2x8x1x5xf32>
    %c0_25 = arith.constant 0 : index
    %c0_26 = arith.constant 0 : index
    %c0_27 = arith.constant 0 : index
    %c0_28 = arith.constant 0 : index
    %11 = vector.load %arg4[%c0_25, %c0_26, %c0_27, %c0_28] : memref<2x8x18x5xf32, #tpu.memory_space<vmem>>, vector<2x8x1x5xf32>
    tpu.vector_store %arg4[%c0_25, %c0_26, %c0_27, %c0_28], %10 {strides = array<i32>} : memref<2x8x18x5xf32, #tpu.memory_space<vmem>>, vector<2x8x1x5xf32>,
    %c0_29 = arith.constant 0 : index
    %c0_30 = arith.constant 0 : index
    %c17_31 = arith.constant 17 : index
    %c0_32 = arith.constant 0 : index
    %12 = vector.load %arg4[%c0_29, %c0_30, %c17_31, %c0_32] : memref<2x8x18x5xf32, #tpu.memory_space<vmem>>, vector<2x8x1x5xf32>
    tpu.vector_store %arg4[%c0_29, %c0_30, %c17_31, %c0_32], %10 {strides = array<i32>} : memref<2x8x18x5xf32, #tpu.memory_space<vmem>>, vector<2x8x1x5xf32>,
    %c0_33 = arith.constant 0 : index
    %c0_34 = arith.constant 0 : index
    %c1_35 = arith.constant 1 : index
    %c0_36 = arith.constant 0 : index
    %13 = vector.load %arg4[%c0_33, %c0_34, %c1_35, %c0_36] : memref<2x8x18x5xf32, #tpu.memory_space<vmem>>, vector<2x8x16x5xf32>
    tpu.vector_store %arg4[%c0_33, %c0_34, %c1_35, %c0_36], %9 {strides = array<i32>} : memref<2x8x18x5xf32, #tpu.memory_space<vmem>>, vector<2x8x16x5xf32>,
    %c0_37 = arith.constant 0 : index
    %c0_38 = arith.constant 0 : index
    %c0_39 = arith.constant 0 : index
    %c0_40 = arith.constant 0 : index
    %14 = tpu.strided_load %arg4[%c0_37, %c0_38, %c0_39, %c0_40] {strides = array<i32: 1, 1, 2, 1>} : memref<2x8x18x5xf32, #tpu.memory_space<vmem>>, vector<2x8x8x5xf32>
    %c0_41 = arith.constant 0 : index
    %c0_42 = arith.constant 0 : index
    %c1_43 = arith.constant 1 : index
    %c0_44 = arith.constant 0 : index
    %15 = tpu.strided_load %arg4[%c0_41, %c0_42, %c1_43, %c0_44] {strides = array<i32: 1, 1, 2, 1>} : memref<2x8x18x5xf32, #tpu.memory_space<vmem>>, vector<2x8x8x5xf32>
    %16 = arith.maximumf %14, %15 : vector<2x8x8x5xf32>
    %c0_45 = arith.constant 0 : index
    %c0_46 = arith.constant 0 : index
    %c2_47 = arith.constant 2 : index
    %c0_48 = arith.constant 0 : index
    %17 = tpu.strided_load %arg4[%c0_45, %c0_46, %c2_47, %c0_48] {strides = array<i32: 1, 1, 2, 1>} : memref<2x8x18x5xf32, #tpu.memory_space<vmem>>, vector<2x8x8x5xf32>
    %18 = arith.maximumf %16, %17 : vector<2x8x8x5xf32>
    %cst_49 = arith.constant -1.000000e+30 : f32
    %19 = vector.broadcast %cst_49 : f32 to vector<2x1x8x5xf32>
    %c0_50 = arith.constant 0 : index
    %c0_51 = arith.constant 0 : index
    %c0_52 = arith.constant 0 : index
    %c0_53 = arith.constant 0 : index
    %20 = vector.load %arg3[%c0_50, %c0_51, %c0_52, %c0_53] : memref<2x18x16x5xf32, #tpu.memory_space<vmem>>, vector<2x1x8x5xf32>
    tpu.vector_store %arg3[%c0_50, %c0_51, %c0_52, %c0_53], %19 {strides = array<i32>} : memref<2x18x16x5xf32, #tpu.memory_space<vmem>>, vector<2x1x8x5xf32>,
    %c0_54 = arith.constant 0 : index
    %c9 = arith.constant 9 : index
    %c0_55 = arith.constant 0 : index
    %c0_56 = arith.constant 0 : index
    %21 = vector.load %arg3[%c0_54, %c9, %c0_55, %c0_56] : memref<2x18x16x5xf32, #tpu.memory_space<vmem>>, vector<2x1x8x5xf32>
    tpu.vector_store %arg3[%c0_54, %c9, %c0_55, %c0_56], %19 {strides = array<i32>} : memref<2x18x16x5xf32, #tpu.memory_space<vmem>>, vector<2x1x8x5xf32>,
    %c0_57 = arith.constant 0 : index
    %c1_58 = arith.constant 1 : index
    %c0_59 = arith.constant 0 : index
    %c0_60 = arith.constant 0 : index
    %22 = vector.load %arg3[%c0_57, %c1_58, %c0_59, %c0_60] : memref<2x18x16x5xf32, #tpu.memory_space<vmem>>, vector<2x8x8x5xf32>
    tpu.vector_store %arg3[%c0_57, %c1_58, %c0_59, %c0_60], %18 {strides = array<i32>} : memref<2x18x16x5xf32, #tpu.memory_space<vmem>>, vector<2x8x8x5xf32>,
    %c0_61 = arith.constant 0 : index
    %c0_62 = arith.constant 0 : index
    %c0_63 = arith.constant 0 : index
    %c0_64 = arith.constant 0 : index
    %23 = tpu.strided_load %arg3[%c0_61, %c0_62, %c0_63, %c0_64] {strides = array<i32: 1, 2, 1, 1>} : memref<2x18x16x5xf32, #tpu.memory_space<vmem>>, vector<2x4x8x5xf32>
    %c0_65 = arith.constant 0 : index
    %c1_66 = arith.constant 1 : index
    %c0_67 = arith.constant 0 : index
    %c0_68 = arith.constant 0 : index
    %24 = tpu.strided_load %arg3[%c0_65, %c1_66, %c0_67, %c0_68] {strides = array<i32: 1, 2, 1, 1>} : memref<2x18x16x5xf32, #tpu.memory_space<vmem>>, vector<2x4x8x5xf32>
    %25 = arith.maximumf %23, %24 : vector<2x4x8x5xf32>
    %c0_69 = arith.constant 0 : index
    %c2_70 = arith.constant 2 : index
    %c0_71 = arith.constant 0 : index
    %c0_72 = arith.constant 0 : index
    %26 = tpu.strided_load %arg3[%c0_69, %c2_70, %c0_71, %c0_72] {strides = array<i32: 1, 2, 1, 1>} : memref<2x18x16x5xf32, #tpu.memory_space<vmem>>, vector<2x4x8x5xf32>
    %27 = arith.maximumf %25, %26 : vector<2x4x8x5xf32>
    %cst_73 = arith.constant -1.000000e+30 : f32
    %28 = vector.broadcast %cst_73 : f32 to vector<2x4x1x5xf32>
    %c0_74 = arith.constant 0 : index
    %c0_75 = arith.constant 0 : index
    %c0_76 = arith.constant 0 : index
    %c0_77 = arith.constant 0 : index
    %29 = vector.load %arg4[%c0_74, %c0_75, %c0_76, %c0_77] : memref<2x8x18x5xf32, #tpu.memory_space<vmem>>, vector<2x4x1x5xf32>
    tpu.vector_store %arg4[%c0_74, %c0_75, %c0_76, %c0_77], %28 {strides = array<i32>} : memref<2x8x18x5xf32, #tpu.memory_space<vmem>>, vector<2x4x1x5xf32>,
    %c0_78 = arith.constant 0 : index
    %c0_79 = arith.constant 0 : index
    %c9_80 = arith.constant 9 : index
    %c0_81 = arith.constant 0 : index
    %30 = vector.load %arg4[%c0_78, %c0_79, %c9_80, %c0_81] : memref<2x8x18x5xf32, #tpu.memory_space<vmem>>, vector<2x4x1x5xf32>
    tpu.vector_store %arg4[%c0_78, %c0_79, %c9_80, %c0_81], %28 {strides = array<i32>} : memref<2x8x18x5xf32, #tpu.memory_space<vmem>>, vector<2x4x1x5xf32>,
    %c0_82 = arith.constant 0 : index
    %c0_83 = arith.constant 0 : index
    %c1_84 = arith.constant 1 : index
    %c0_85 = arith.constant 0 : index
    %31 = vector.load %arg4[%c0_82, %c0_83, %c1_84, %c0_85] : memref<2x8x18x5xf32, #tpu.memory_space<vmem>>, vector<2x4x8x5xf32>
    tpu.vector_store %arg4[%c0_82, %c0_83, %c1_84, %c0_85], %27 {strides = array<i32>} : memref<2x8x18x5xf32, #tpu.memory_space<vmem>>, vector<2x4x8x5xf32>,
    %c0_86 = arith.constant 0 : index
    %c0_87 = arith.constant 0 : index
    %c0_88 = arith.constant 0 : index
    %c0_89 = arith.constant 0 : index
    %32 = tpu.strided_load %arg4[%c0_86, %c0_87, %c0_88, %c0_89] {strides = array<i32: 1, 1, 2, 1>} : memref<2x8x18x5xf32, #tpu.memory_space<vmem>>, vector<2x4x4x5xf32>
    %c0_90 = arith.constant 0 : index
    %c0_91 = arith.constant 0 : index
    %c1_92 = arith.constant 1 : index
    %c0_93 = arith.constant 0 : index
    %33 = tpu.strided_load %arg4[%c0_90, %c0_91, %c1_92, %c0_93] {strides = array<i32: 1, 1, 2, 1>} : memref<2x8x18x5xf32, #tpu.memory_space<vmem>>, vector<2x4x4x5xf32>
    %34 = arith.maximumf %32, %33 : vector<2x4x4x5xf32>
    %c0_94 = arith.constant 0 : index
    %c0_95 = arith.constant 0 : index
    %c2_96 = arith.constant 2 : index
    %c0_97 = arith.constant 0 : index
    %35 = tpu.strided_load %arg4[%c0_94, %c0_95, %c2_96, %c0_97] {strides = array<i32: 1, 1, 2, 1>} : memref<2x8x18x5xf32, #tpu.memory_space<vmem>>, vector<2x4x4x5xf32>
    %36 = arith.maximumf %34, %35 : vector<2x4x4x5xf32>
    %37 = vector.extract_strided_slice %36 {offsets = [0, 0, 0, 0], sizes = [2, 4, 4, 4], strides = [1, 1, 1, 1]} : vector<2x4x4x5xf32> to vector<2x4x4x4xf32>
    %38 = vector.extract_strided_slice %36 {offsets = [0, 0, 0, 4], sizes = [2, 4, 4, 1], strides = [1, 1, 1, 1]} : vector<2x4x4x5xf32> to vector<2x4x4x1xf32>
    %cst_98 = arith.constant 0.000000e+00 : f32
    %39 = vector.broadcast %cst_98 : f32 to vector<2x4x4x1xf32>
    %40 = arith.cmpf ogt, %38, %39 : vector<2x4x4x1xf32>
    %cst_99 = arith.constant 0.000000e+00 : f32
    %41 = vector.shape_cast %40 : vector<2x4x4x1xi1> to vector<2x4x4x1xi1>
    %42 = vector.broadcast %41 : vector<2x4x4x1xi1> to vector<2x4x4x4xi1>
    %43 = vector.broadcast %cst_99 : f32 to vector<2x4x4x4xf32>
    %44 = arith.select %42, %37, %43 : vector<2x4x4x4xi1>, vector<2x4x4x4xf32>
    %c0_100 = arith.constant 0 : index
    %c0_101 = arith.constant 0 : index
    %c0_102 = arith.constant 0 : index
    %c0_103 = arith.constant 0 : index
    %45 = vector.load %arg2[%c0_100, %c0_101, %c0_102, %c0_103] : memref<2x4x4x4xf32, #tpu.memory_space<vmem>>, vector<2x4x4x4xf32>
    tpu.vector_store %arg2[%c0_100, %c0_101, %c0_102, %c0_103], %44 {strides = array<i32>} : memref<2x4x4x4xf32, #tpu.memory_space<vmem>>, vector<2x4x4x4xf32>,
    return
  }
  func.func @transform_0(%arg0: i32) -> (i32, i32, i32, i32) {
    %c0_i32 = arith.constant 0 : i32
    %c0_i32_0 = arith.constant 0 : i32
    %c0_i32_1 = arith.constant 0 : i32
    %c0_i32_2 = arith.constant 0 : i32
    return %arg0, %c0_i32, %c0_i32_0, %c0_i32_1 : i32, i32, i32, i32
  }
  func.func @transform_1(%arg0: i32) -> (i32, i32, i32, i32) {
    %c0_i32 = arith.constant 0 : i32
    %c0_i32_0 = arith.constant 0 : i32
    %c0_i32_1 = arith.constant 0 : i32
    %c0_i32_2 = arith.constant 0 : i32
    return %arg0, %c0_i32, %c0_i32_0, %c0_i32_1 : i32, i32, i32, i32
  }
}

</mosaic_0001>

<llo_original>
// kernel: tpu_custom_call.1
$region0: #{tpu_custom_call.1}
  #allocation0 [shape = 'u32[]', space=smem, size = 0x4, offset = 0x4, fixed_abs, tag = 'smem constant byte address 0x4 - core index']
  #allocation1 [shape = 'u32[72,128]{1,0:T(1,128)}', space=vmem, size = 0x9000, scoped, tag = 'internal scratch']
  #allocation2 [shape = 'f32[2,18,16,5]{3,2,1,0:T(8,128)}', space=vmem, size = 0x48000, scoped, tag = 'scratch operand']
  #allocation3 [shape = 'f32[2,8,18,5]{3,2,1,0:T(8,128)}', space=vmem, size = 0x30000, scoped, tag = 'scratch operand']
  %s0 = inlined_call_operand.vmem [shape: f32[2,16,16,5], index: 0, kind: input, shape index: {}]
  %s1 = inlined_call_operand.hbm [shape: f32[2,4,4,4], index: 1, kind: output, shape index: {}]
  %s2 = sld [smem:[#allocation0]]
  $region14: #{tpu_custom_call.1} parent=0
    _
  %s4 = ssub.s32 1, %s2
  %s5 = scalar_select 0, %s4, %s2
  $region1: #{tpu_custom_call.1} parent=0
    #allocation4 [shape = 'u8[16384]{0}', space=vmem, size = 0x4000, scoped, tag = 'output window, operand 0, single buffered']
    #allocation5 [shape = 's32[1]{0}', space=sflag, size = 0x4, scoped, tag = 'scoped memory for tpu_custom_call.1']
    %6 = vsyncpa [#allocation5], 0
    // Predicated region
    $region2: #{tpu_custom_call.1} parent=1 // pred_check
      _
    $region3: #{tpu_custom_call.1} parent=1 // pred_check_branch
      %8 = sbr.rel (0) target = $region5
    $region4: #{tpu_custom_call.1} parent=1 // pred_region
      _
    $region5: #{tpu_custom_call.1} parent=1 // pred_fallthru
      _
    %v9 = vld [vmem:[%s0] sm:$0xff]
    %v10 = vld [vmem:[%s0 + $0x8] sm:$0xff]
    %v11 = vld [vmem:[%s0 + $0x10] sm:$0xff]
    %v12 = vld [vmem:[%s0 + $0x18] sm:$0xff]
    %v13 = vld [vmem:[%s0 + $0x20] sm:$0xff]
    %v14 = vld [vmem:[%s0 + $0x28] sm:$0xff]
    %v15 = vld [vmem:[%s0 + $0x30] sm:$0xff]
    %v16 = vld [vmem:[%s0 + $0x38] sm:$0xff]
    %v17 = vld [vmem:[%s0 + $0x40] sm:$0xff]
    %v18 = vld [vmem:[%s0 + $0x48] sm:$0xff]
    %v19 = vld [vmem:[%s0 + $0x50] sm:$0xff]
    %v20 = vld [vmem:[%s0 + $0x58] sm:$0xff]
    %v21 = vld [vmem:[%s0 + $0x60] sm:$0xff]
    %v22 = vld [vmem:[%s0 + $0x68] sm:$0xff]
    %v23 = vld [vmem:[%s0 + $0x70] sm:$0xff]
    %v24 = vld [vmem:[%s0 + $0x78] sm:$0xff]
    %v25 = vld [vmem:[%s0 + $0x80] sm:$0xff]
    %v26 = vld [vmem:[%s0 + $0x88] sm:$0xff]
    %v27 = vld [vmem:[%s0 + $0x90] sm:$0xff]
    %v28 = vld [vmem:[%s0 + $0x98] sm:$0xff]
    %v29 = vld [vmem:[%s0 + $0xa0] sm:$0xff]
    %v30 = vld [vmem:[%s0 + $0xa8] sm:$0xff]
    %v31 = vld [vmem:[%s0 + $0xb0] sm:$0xff]
    %v32 = vld [vmem:[%s0 + $0xb8] sm:$0xff]
    %v33 = vld [vmem:[%s0 + $0xc0] sm:$0xff]
    %v34 = vld [vmem:[%s0 + $0xc8] sm:$0xff]
    %v35 = vld [vmem:[%s0 + $0xd0] sm:$0xff]
    %v36 = vld [vmem:[%s0 + $0xd8] sm:$0xff]
    %v37 = vld [vmem:[%s0 + $0xe0] sm:$0xff]
    %v38 = vld [vmem:[%s0 + $0xe8] sm:$0xff]
    %v39 = vld [vmem:[%s0 + $0xf0] sm:$0xff]
    %v40 = vld [vmem:[%s0 + $0xf8] sm:$0xff]
    %v41 = vld [vmem:[%s0 + $0x100] sm:$0xff]
    %v42 = vld [vmem:[%s0 + $0x108] sm:$0xff]
    %v43 = vld [vmem:[%s0 + $0x110] sm:$0xff]
    %v44 = vld [vmem:[%s0 + $0x118] sm:$0xff]
    %v45 = vld [vmem:[%s0 + $0x120] sm:$0xff]
    %v46 = vld [vmem:[%s0 + $0x128] sm:$0xff]
    %v47 = vld [vmem:[%s0 + $0x130] sm:$0xff]
    %v48 = vld [vmem:[%s0 + $0x138] sm:$0xff]
    %v49 = vld [vmem:[%s0 + $0x140] sm:$0xff]
    %v50 = vld [vmem:[%s0 + $0x148] sm:$0xff]
    %v51 = vld [vmem:[%s0 + $0x150] sm:$0xff]
    %v52 = vld [vmem:[%s0 + $0x158] sm:$0xff]
    %v53 = vld [vmem:[%s0 + $0x160] sm:$0xff]
    %v54 = vld [vmem:[%s0 + $0x168] sm:$0xff]
    %v55 = vld [vmem:[%s0 + $0x170] sm:$0xff]
    %v56 = vld [vmem:[%s0 + $0x178] sm:$0xff]
    %v57 = vld [vmem:[%s0 + $0x180] sm:$0xff]
    %v58 = vld [vmem:[%s0 + $0x188] sm:$0xff]
    %v59 = vld [vmem:[%s0 + $0x190] sm:$0xff]
    %v60 = vld [vmem:[%s0 + $0x198] sm:$0xff]
    %v61 = vld [vmem:[%s0 + $0x1a0] sm:$0xff]
    %v62 = vld [vmem:[%s0 + $0x1a8] sm:$0xff]
    %v63 = vld [vmem:[%s0 + $0x1b0] sm:$0xff]
    %v64 = vld [vmem:[%s0 + $0x1b8] sm:$0xff]
    %v65 = vld [vmem:[%s0 + $0x1c0] sm:$0xff]
    %v66 = vld [vmem:[%s0 + $0x1c8] sm:$0xff]
    %v67 = vld [vmem:[%s0 + $0x1d0] sm:$0xff]
    %v68 = vld [vmem:[%s0 + $0x1d8] sm:$0xff]
    %v69 = vld [vmem:[%s0 + $0x1e0] sm:$0xff]
    %v70 = vld [vmem:[%s0 + $0x1e8] sm:$0xff]
    %v71 = vld [vmem:[%s0 + $0x1f0] sm:$0xff]
    %v72 = vld [vmem:[%s0 + $0x1f8] sm:$0xff]
    %vm73 = vcmask 39936
    %74 = vst.msk [vmem:[#allocation2] sm:$0xff] %vm73, -1e+30
    %75 = vst.msk [vmem:[#allocation2 + $0x8] sm:$0xff] %vm73, -1e+30
    %76 = vst.msk [vmem:[#allocation2 + $0x120] sm:$0xff] %vm73, -1e+30
    %77 = vst.msk [vmem:[#allocation2 + $0x128] sm:$0xff] %vm73, -1e+30
    %s78 = scalar_lea.vmem [#allocation2], 272
    %79 = vst.msk [vmem:[%s78] sm:$0xff] %vm73, -1e+30
    %80 = vst.msk [vmem:[%s78 + $0x8] sm:$0xff] %vm73, -1e+30
    %81 = vst.msk [vmem:[%s78 + $0x120] sm:$0xff] %vm73, -1e+30
    %82 = vst.msk [vmem:[%s78 + $0x128] sm:$0xff] %vm73, -1e+30
    %s83 = scalar_lea.vmem [#allocation2], 16
    %84 = vst.msk [vmem:[%s83] sm:$0xff] %vm73, %v9
    %85 = vst.msk [vmem:[%s83 + $0x8] sm:$0xff] %vm73, %v10
    %86 = vst.msk [vmem:[%s83 + $0x10] sm:$0xff] %vm73, %v11
    %87 = vst.msk [vmem:[%s83 + $0x18] sm:$0xff] %vm73, %v12
    %88 = vst.msk [vmem:[%s83 + $0x20] sm:$0xff] %vm73, %v13
    %89 = vst.msk [vmem:[%s83 + $0x28] sm:$0xff] %vm73, %v14
    %90 = vst.msk [vmem:[%s83 + $0x30] sm:$0xff] %vm73, %v15
    %91 = vst.msk [vmem:[%s83 + $0x38] sm:$0xff] %vm73, %v16
    %92 = vst.msk [vmem:[%s83 + $0x40] sm:$0xff] %vm73, %v17
    %93 = vst.msk [vmem:[%s83 + $0x48] sm:$0xff] %vm73, %v18
    %94 = vst.msk [vmem:[%s83 + $0x50] sm:$0xff] %vm73, %v19
    %95 = vst.msk [vmem:[%s83 + $0x58] sm:$0xff] %vm73, %v20
    %96 = vst.msk [vmem:[%s83 + $0x60] sm:$0xff] %vm73, %v21
    %97 = vst.msk [vmem:[%s83 + $0x68] sm:$0xff] %vm73, %v22
    %98 = vst.msk [vmem:[%s83 + $0x70] sm:$0xff] %vm73, %v23
    %99 = vst.msk [vmem:[%s83 + $0x78] sm:$0xff] %vm73, %v24
    %100 = vst.msk [vmem:[%s83 + $0x80] sm:$0xff] %vm73, %v25
    %101 = vst.msk [vmem:[%s83 + $0x88] sm:$0xff] %vm73, %v26
    %102 = vst.msk [vmem:[%s83 + $0x90] sm:$0xff] %vm73, %v27
    %103 = vst.msk [vmem:[%s83 + $0x98] sm:$0xff] %vm73, %v28
    %104 = vst.msk [vmem:[%s83 + $0xa0] sm:$0xff] %vm73, %v29
    %105 = vst.msk [vmem:[%s83 + $0xa8] sm:$0xff] %vm73, %v30
    %106 = vst.msk [vmem:[%s83 + $0xb0] sm:$0xff] %vm73, %v31
    %107 = vst.msk [vmem:[%s83 + $0xb8] sm:$0xff] %vm73, %v32
    %108 = vst.msk [vmem:[%s83 + $0xc0] sm:$0xff] %vm73, %v33
    %109 = vst.msk [vmem:[%s83 + $0xc8] sm:$0xff] %vm73, %v34
    %110 = vst.msk [vmem:[%s83 + $0xd0] sm:$0xff] %vm73, %v35
    %111 = vst.msk [vmem:[%s83 + $0xd8] sm:$0xff] %vm73, %v36
    %112 = vst.msk [vmem:[%s83 + $0xe0] sm:$0xff] %vm73, %v37
    %113 = vst.msk [vmem:[%s83 + $0xe8] sm:$0xff] %vm73, %v38
    %114 = vst.msk [vmem:[%s83 + $0xf0] sm:$0xff] %vm73, %v39
    %115 = vst.msk [vmem:[%s83 + $0xf8] sm:$0xff] %vm73, %v40
    %116 = vst.msk [vmem:[%s83 + $0x120] sm:$0xff] %vm73, %v41
    %117 = vst.msk [vmem:[%s83 + $0x128] sm:$0xff] %vm73, %v42
    %118 = vst.msk [vmem:[%s83 + $0x130] sm:$0xff] %vm73, %v43
    %119 = vst.msk [vmem:[%s83 + $0x138] sm:$0xff] %vm73, %v44
    %120 = vst.msk [vmem:[%s83 + $0x140] sm:$0xff] %vm73, %v45
    %121 = vst.msk [vmem:[%s83 + $0x148] sm:$0xff] %vm73, %v46
    %122 = vst.msk [vmem:[%s83 + $0x150] sm:$0xff] %vm73, %v47
    %123 = vst.msk [vmem:[%s83 + $0x158] sm:$0xff] %vm73, %v48
    %124 = vst.msk [vmem:[%s83 + $0x160] sm:$0xff] %vm73, %v49
    %125 = vst.msk [vmem:[%s83 + $0x168] sm:$0xff] %vm73, %v50
    %126 = vst.msk [vmem:[%s83 + $0x170] sm:$0xff] %vm73, %v51
    %127 = vst.msk [vmem:[%s83 + $0x178] sm:$0xff] %vm73, %v52
    %128 = vst.msk [vmem:[%s83 + $0x180] sm:$0xff] %vm73, %v53
    %129 = vst.msk [vmem:[%s83 + $0x188] sm:$0xff] %vm73, %v54
    %130 = vst.msk [vmem:[%s83 + $0x190] sm:$0xff] %vm73, %v55
    %131 = vst.msk [vmem:[%s83 + $0x198] sm:$0xff] %vm73, %v56
    %132 = vst.msk [vmem:[%s83 + $0x1a0] sm:$0xff] %vm73, %v57
    %133 = vst.msk [vmem:[%s83 + $0x1a8] sm:$0xff] %vm73, %v58
    %134 = vst.msk [vmem:[%s83 + $0x1b0] sm:$0xff] %vm73, %v59
    %135 = vst.msk [vmem:[%s83 + $0x1b8] sm:$0xff] %vm73, %v60
    %136 = vst.msk [vmem:[%s83 + $0x1c0] sm:$0xff] %vm73, %v61
    %137 = vst.msk [vmem:[%s83 + $0x1c8] sm:$0xff] %vm73, %v62
    %138 = vst.msk [vmem:[%s83 + $0x1d0] sm:$0xff] %vm73, %v63
    %139 = vst.msk [vmem:[%s83 + $0x1d8] sm:$0xff] %vm73, %v64
    %140 = vst.msk [vmem:[%s83 + $0x1e0] sm:$0xff] %vm73, %v65
    %141 = vst.msk [vmem:[%s83 + $0x1e8] sm:$0xff] %vm73, %v66
    %142 = vst.msk [vmem:[%s83 + $0x1f0] sm:$0xff] %vm73, %v67
    %143 = vst.msk [vmem:[%s83 + $0x1f8] sm:$0xff] %vm73, %v68
    %144 = vst.msk [vmem:[%s83 + $0x200] sm:$0xff] %vm73, %v69
    %145 = vst.msk [vmem:[%s83 + $0x208] sm:$0xff] %vm73, %v70
    %146 = vst.msk [vmem:[%s83 + $0x210] sm:$0xff] %vm73, %v71
    %147 = vst.msk [vmem:[%s83 + $0x218] sm:$0xff] %vm73, %v72
    %v148 = vld [vmem:[#allocation2] sm:$0xff]
    %v149 = vld [vmem:[#allocation2 + $0x8] sm:$0xff]
    %v150 = vld [vmem:[#allocation2 + $0x20] sm:$0xff]
    %v151 = vld [vmem:[#allocation2 + $0x28] sm:$0xff]
    %v152 = vld [vmem:[#allocation2 + $0x40] sm:$0xff]
    %v153 = vld [vmem:[#allocation2 + $0x48] sm:$0xff]
    %v154 = vld [vmem:[#allocation2 + $0x60] sm:$0xff]
    %v155 = vld [vmem:[#allocation2 + $0x68] sm:$0xff]
    %v156 = vld [vmem:[#allocation2 + $0x80] sm:$0xff]
    %v157 = vld [vmem:[#allocation2 + $0x88] sm:$0xff]
    %v158 = vld [vmem:[#allocation2 + $0xa0] sm:$0xff]
    %v159 = vld [vmem:[#allocation2 + $0xa8] sm:$0xff]
    %v160 = vld [vmem:[#allocation2 + $0xc0] sm:$0xff]
    %v161 = vld [vmem:[#allocation2 + $0xc8] sm:$0xff]
    %v162 = vld [vmem:[#allocation2 + $0xe0] sm:$0xff]
    %v163 = vld [vmem:[#allocation2 + $0xe8] sm:$0xff]
    %v164 = vld [vmem:[#allocation2 + $0x120] sm:$0xff]
    %v165 = vld [vmem:[#allocation2 + $0x128] sm:$0xff]
    %v166 = vld [vmem:[#allocation2 + $0x140] sm:$0xff]
    %v167 = vld [vmem:[#allocation2 + $0x148] sm:$0xff]
    %v168 = vld [vmem:[#allocation2 + $0x160] sm:$0xff]
    %v169 = vld [vmem:[#allocation2 + $0x168] sm:$0xff]
    %v170 = vld [vmem:[#allocation2 + $0x180] sm:$0xff]
    %v171 = vld [vmem:[#allocation2 + $0x188] sm:$0xff]
    %v172 = vld [vmem:[#allocation2 + $0x1a0] sm:$0xff]
    %v173 = vld [vmem:[#allocation2 + $0x1a8] sm:$0xff]
    %v174 = vld [vmem:[#allocation2 + $0x1c0] sm:$0xff]
    %v175 = vld [vmem:[#allocation2 + $0x1c8] sm:$0xff]
    %v176 = vld [vmem:[#allocation2 + $0x1e0] sm:$0xff]
    %v177 = vld [vmem:[#allocation2 + $0x1e8] sm:$0xff]
    %v178 = vld [vmem:[#allocation2 + $0x200] sm:$0xff]
    %v179 = vld [vmem:[#allocation2 + $0x208] sm:$0xff]
    %v180 = vld [vmem:[%s83] sm:$0xff]
    %v181 = vld [vmem:[%s83 + $0x8] sm:$0xff]
    %v182 = vld [vmem:[%s83 + $0x20] sm:$0xff]
    %v183 = vld [vmem:[%s83 + $0x28] sm:$0xff]
    %v184 = vld [vmem:[%s83 + $0x40] sm:$0xff]
    %v185 = vld [vmem:[%s83 + $0x48] sm:$0xff]
    %v186 = vld [vmem:[%s83 + $0x60] sm:$0xff]
    %v187 = vld [vmem:[%s83 + $0x68] sm:$0xff]
    %v188 = vld [vmem:[%s83 + $0x80] sm:$0xff]
    %v189 = vld [vmem:[%s83 + $0x88] sm:$0xff]
    %v190 = vld [vmem:[%s83 + $0xa0] sm:$0xff]
    %v191 = vld [vmem:[%s83 + $0xa8] sm:$0xff]
    %v192 = vld [vmem:[%s83 + $0xc0] sm:$0xff]
    %v193 = vld [vmem:[%s83 + $0xc8] sm:$0xff]
    %v194 = vld [vmem:[%s83 + $0xe0] sm:$0xff]
    %v195 = vld [vmem:[%s83 + $0xe8] sm:$0xff]
    %v196 = vld [vmem:[%s83 + $0x120] sm:$0xff]
    %v197 = vld [vmem:[%s83 + $0x128] sm:$0xff]
    %v198 = vld [vmem:[%s83 + $0x140] sm:$0xff]
    %v199 = vld [vmem:[%s83 + $0x148] sm:$0xff]
    %v200 = vld [vmem:[%s83 + $0x160] sm:$0xff]
    %v201 = vld [vmem:[%s83 + $0x168] sm:$0xff]
    %v202 = vld [vmem:[%s83 + $0x180] sm:$0xff]
    %v203 = vld [vmem:[%s83 + $0x188] sm:$0xff]
    %v204 = vld [vmem:[%s83 + $0x1a0] sm:$0xff]
    %v205 = vld [vmem:[%s83 + $0x1a8] sm:$0xff]
    %v206 = vld [vmem:[%s83 + $0x1c0] sm:$0xff]
    %v207 = vld [vmem:[%s83 + $0x1c8] sm:$0xff]
    %v208 = vld [vmem:[%s83 + $0x1e0] sm:$0xff]
    %v209 = vld [vmem:[%s83 + $0x1e8] sm:$0xff]
    %v210 = vld [vmem:[%s83 + $0x200] sm:$0xff]
    %v211 = vld [vmem:[%s83 + $0x208] sm:$0xff]
    %v212 = vmax.f32 %v148, %v180
    %v213 = vmax.f32 %v149, %v181
    %v214 = vmax.f32 %v150, %v182
    %v215 = vmax.f32 %v151, %v183
    %v216 = vmax.f32 %v152, %v184
    %v217 = vmax.f32 %v153, %v185
    %v218 = vmax.f32 %v154, %v186
    %v219 = vmax.f32 %v155, %v187
    %v220 = vmax.f32 %v156, %v188
    %v221 = vmax.f32 %v157, %v189
    %v222 = vmax.f32 %v158, %v190
    %v223 = vmax.f32 %v159, %v191
    %v224 = vmax.f32 %v160, %v192
    %v225 = vmax.f32 %v161, %v193
    %v226 = vmax.f32 %v162, %v194
    %v227 = vmax.f32 %v163, %v195
    %v228 = vmax.f32 %v164, %v196
    %v229 = vmax.f32 %v165, %v197
    %v230 = vmax.f32 %v166, %v198
    %v231 = vmax.f32 %v167, %v199
    %v232 = vmax.f32 %v168, %v200
    %v233 = vmax.f32 %v169, %v201
    %v234 = vmax.f32 %v170, %v202
    %v235 = vmax.f32 %v171, %v203
    %v236 = vmax.f32 %v172, %v204
    %v237 = vmax.f32 %v173, %v205
    %v238 = vmax.f32 %v174, %v206
    %v239 = vmax.f32 %v175, %v207
    %v240 = vmax.f32 %v176, %v208
    %v241 = vmax.f32 %v177, %v209
    %v242 = vmax.f32 %v178, %v210
    %v243 = vmax.f32 %v179, %v211
    %s244 = scalar_lea.vmem [#allocation2], 32
    %v245 = vld [vmem:[%s244] sm:$0xff]
    %v246 = vld [vmem:[%s244 + $0x8] sm:$0xff]
    %v247 = vld [vmem:[%s244 + $0x20] sm:$0xff]
    %v248 = vld [vmem:[%s244 + $0x28] sm:$0xff]
    %v249 = vld [vmem:[%s244 + $0x40] sm:$0xff]
    %v250 = vld [vmem:[%s244 + $0x48] sm:$0xff]
    %v251 = vld [vmem:[%s244 + $0x60] sm:$0xff]
    %v252 = vld [vmem:[%s244 + $0x68] sm:$0xff]
    %v253 = vld [vmem:[%s244 + $0x80] sm:$0xff]
    %v254 = vld [vmem:[%s244 + $0x88] sm:$0xff]
    %v255 = vld [vmem:[%s244 + $0xa0] sm:$0xff]
    %v256 = vld [vmem:[%s244 + $0xa8] sm:$0xff]
    %v257 = vld [vmem:[%s244 + $0xc0] sm:$0xff]
    %v258 = vld [vmem:[%s244 + $0xc8] sm:$0xff]
    %v259 = vld [vmem:[%s244 + $0xe0] sm:$0xff]
    %v260 = vld [vmem:[%s244 + $0xe8] sm:$0xff]
    %v261 = vld [vmem:[%s244 + $0x120] sm:$0xff]
    %v262 = vld [vmem:[%s244 + $0x128] sm:$0xff]
    %v263 = vld [vmem:[%s244 + $0x140] sm:$0xff]
    %v264 = vld [vmem:[%s244 + $0x148] sm:$0xff]
    %v265 = vld [vmem:[%s244 + $0x160] sm:$0xff]
    %v266 = vld [vmem:[%s244 + $0x168] sm:$0xff]
    %v267 = vld [vmem:[%s244 + $0x180] sm:$0xff]
    %v268 = vld [vmem:[%s244 + $0x188] sm:$0xff]
    %v269 = vld [vmem:[%s244 + $0x1a0] sm:$0xff]
    %v270 = vld [vmem:[%s244 + $0x1a8] sm:$0xff]
    %v271 = vld [vmem:[%s244 + $0x1c0] sm:$0xff]
    %v272 = vld [vmem:[%s244 + $0x1c8] sm:$0xff]
    %v273 = vld [vmem:[%s244 + $0x1e0] sm:$0xff]
    %v274 = vld [vmem:[%s244 + $0x1e8] sm:$0xff]
    %v275 = vld [vmem:[%s244 + $0x200] sm:$0xff]
    %v276 = vld [vmem:[%s244 + $0x208] sm:$0xff]
    %v277 = vmax.f32 %v212, %v245
    %v278 = vmax.f32 %v213, %v246
    %v279 = vmax.f32 %v214, %v247
    %v280 = vmax.f32 %v215, %v248
    %v281 = vmax.f32 %v216, %v249
    %v282 = vmax.f32 %v217, %v250
    %v283 = vmax.f32 %v218, %v251
    %v284 = vmax.f32 %v219, %v252
    %v285 = vmax.f32 %v220, %v253
    %v286 = vmax.f32 %v221, %v254
    %v287 = vmax.f32 %v222, %v255
    %v288 = vmax.f32 %v223, %v256
    %v289 = vmax.f32 %v224, %v257
    %v290 = vmax.f32 %v225, %v258
    %v291 = vmax.f32 %v226, %v259
    %v292 = vmax.f32 %v227, %v260
    %v293 = vmax.f32 %v228, %v261
    %v294 = vmax.f32 %v229, %v262
    %v295 = vmax.f32 %v230, %v263
    %v296 = vmax.f32 %v231, %v264
    %v297 = vmax.f32 %v232, %v265
    %v298 = vmax.f32 %v233, %v266
    %v299 = vmax.f32 %v234, %v267
    %v300 = vmax.f32 %v235, %v268
    %v301 = vmax.f32 %v236, %v269
    %v302 = vmax.f32 %v237, %v270
    %v303 = vmax.f32 %v238, %v271
    %v304 = vmax.f32 %v239, %v272
    %v305 = vmax.f32 %v240, %v273
    %v306 = vmax.f32 %v241, %v274
    %v307 = vmax.f32 %v242, %v275
    %v308 = vmax.f32 %v243, %v276
    %vm309 = vcmask 32768
    %310 = vst.msk [vmem:[#allocation3] sm:$0x1] %vm309, -1e+30
    %311 = vst.msk [vmem:[#allocation3 + $0x18] sm:$0x1] %vm309, -1e+30
    %312 = vst.msk [vmem:[#allocation3 + $0x30] sm:$0x1] %vm309, -1e+30
    %313 = vst.msk [vmem:[#allocation3 + $0x48] sm:$0x1] %vm309, -1e+30
    %314 = vst.msk [vmem:[#allocation3 + $0x60] sm:$0x1] %vm309, -1e+30
    %315 = vst.msk [vmem:[#allocation3 + $0x78] sm:$0x1] %vm309, -1e+30
    %316 = vst.msk [vmem:[#allocation3 + $0x90] sm:$0x1] %vm309, -1e+30
    %317 = vst.msk [vmem:[#allocation3 + $0xa8] sm:$0x1] %vm309, -1e+30
    %318 = vst.msk [vmem:[#allocation3 + $0xc0] sm:$0x1] %vm309, -1e+30
    %319 = vst.msk [vmem:[#allocation3 + $0xd8] sm:$0x1] %vm309, -1e+30
    %320 = vst.msk [vmem:[#allocation3 + $0xf0] sm:$0x1] %vm309, -1e+30
    %321 = vst.msk [vmem:[#allocation3 + $0x108] sm:$0x1] %vm309, -1e+30
    %322 = vst.msk [vmem:[#allocation3 + $0x120] sm:$0x1] %vm309, -1e+30
    %323 = vst.msk [vmem:[#allocation3 + $0x138] sm:$0x1] %vm309, -1e+30
    %324 = vst.msk [vmem:[#allocation3 + $0x150] sm:$0x1] %vm309, -1e+30
    %325 = vst.msk [vmem:[#allocation3 + $0x168] sm:$0x1] %vm309, -1e+30
    %326 = vst.msk [vmem:[#allocation3 + $0x11] sm:$0x1] %vm309, -1e+30
    %327 = vst.msk [vmem:[#allocation3 + $0x29] sm:$0x1] %vm309, -1e+30
    %328 = vst.msk [vmem:[#allocation3 + $0x41] sm:$0x1] %vm309, -1e+30
    %329 = vst.msk [vmem:[#allocation3 + $0x59] sm:$0x1] %vm309, -1e+30
    %330 = vst.msk [vmem:[#allocation3 + $0x71] sm:$0x1] %vm309, -1e+30
    %331 = vst.msk [vmem:[#allocation3 + $0x89] sm:$0x1] %vm309, -1e+30
    %332 = vst.msk [vmem:[#allocation3 + $0xa1] sm:$0x1] %vm309, -1e+30
    %333 = vst.msk [vmem:[#allocation3 + $0xb9] sm:$0x1] %vm309, -1e+30
    %334 = vst.msk [vmem:[#allocation3 + $0xd1] sm:$0x1] %vm309, -1e+30
    %335 = vst.msk [vmem:[#allocation3 + $0xe9] sm:$0x1] %vm309, -1e+30
    %336 = vst.msk [vmem:[#allocation3 + $0x101] sm:$0x1] %vm309, -1e+30
    %337 = vst.msk [vmem:[#allocation3 + $0x119] sm:$0x1] %vm309, -1e+30
    %338 = vst.msk [vmem:[#allocation3 + $0x131] sm:$0x1] %vm309, -1e+30
    %339 = vst.msk [vmem:[#allocation3 + $0x149] sm:$0x1] %vm309, -1e+30
    %340 = vst.msk [vmem:[#allocation3 + $0x161] sm:$0x1] %vm309, -1e+30
    %341 = vst.msk [vmem:[#allocation3 + $0x179] sm:$0x1] %vm309, -1e+30
    %342 = vst.msk [vmem:[#allocation3 + $0x1] sm:$0xff] %vm73, %v277
    %343 = vst.msk [vmem:[#allocation3 + $0x9] sm:$0xff] %vm73, %v278
    %344 = vst.msk [vmem:[#allocation3 + $0x19] sm:$0xff] %vm73, %v279
    %345 = vst.msk [vmem:[#allocation3 + $0x21] sm:$0xff] %vm73, %v280
    %346 = vst.msk [vmem:[#allocation3 + $0x31] sm:$0xff] %vm73, %v281
    %347 = vst.msk [vmem:[#allocation3 + $0x39] sm:$0xff] %vm73, %v282
    %348 = vst.msk [vmem:[#allocation3 + $0x49] sm:$0xff] %vm73, %v283
    %349 = vst.msk [vmem:[#allocation3 + $0x51] sm:$0xff] %vm73, %v284
    %350 = vst.msk [vmem:[#allocation3 + $0x61] sm:$0xff] %vm73, %v285
    %351 = vst.msk [vmem:[#allocation3 + $0x69] sm:$0xff] %vm73, %v286
    %352 = vst.msk [vmem:[#allocation3 + $0x79] sm:$0xff] %vm73, %v287
    %353 = vst.msk [vmem:[#allocation3 + $0x81] sm:$0xff] %vm73, %v288
    %354 = vst.msk [vmem:[#allocation3 + $0x91] sm:$0xff] %vm73, %v289
    %355 = vst.msk [vmem:[#allocation3 + $0x99] sm:$0xff] %vm73, %v290
    %356 = vst.msk [vmem:[#allocation3 + $0xa9] sm:$0xff] %vm73, %v291
    %357 = vst.msk [vmem:[#allocation3 + $0xb1] sm:$0xff] %vm73, %v292
    %358 = vst.msk [vmem:[#allocation3 + $0xc1] sm:$0xff] %vm73, %v293
    %359 = vst.msk [vmem:[#allocation3 + $0xc9] sm:$0xff] %vm73, %v294
    %360 = vst.msk [vmem:[#allocation3 + $0xd9] sm:$0xff] %vm73, %v295
    %361 = vst.msk [vmem:[#allocation3 + $0xe1] sm:$0xff] %vm73, %v296
    %362 = vst.msk [vmem:[#allocation3 + $0xf1] sm:$0xff] %vm73, %v297
    %363 = vst.msk [vmem:[#allocation3 + $0xf9] sm:$0xff] %vm73, %v298
    %364 = vst.msk [vmem:[#allocation3 + $0x109] sm:$0xff] %vm73, %v299
    %365 = vst.msk [vmem:[#allocation3 + $0x111] sm:$0xff] %vm73, %v300
    %366 = vst.msk [vmem:[#allocation3 + $0x121] sm:$0xff] %vm73, %v301
    %367 = vst.msk [vmem:[#allocation3 + $0x129] sm:$0xff] %vm73, %v302
    %368 = vst.msk [vmem:[#allocation3 + $0x139] sm:$0xff] %vm73, %v303
    %369 = vst.msk [vmem:[#allocation3 + $0x141] sm:$0xff] %vm73, %v304
    %370 = vst.msk [vmem:[#allocation3 + $0x151] sm:$0xff] %vm73, %v305
    %371 = vst.msk [vmem:[#allocation3 + $0x159] sm:$0xff] %vm73, %v306
    %372 = vst.msk [vmem:[#allocation3 + $0x169] sm:$0xff] %vm73, %v307
    %373 = vst.msk [vmem:[#allocation3 + $0x171] sm:$0xff] %vm73, %v308
    %v374 = vld [vmem:[#allocation3] ss:$2 sm:$0xff]
    %s375 = scalar_lea.vmem [#allocation3], 24
    %v376 = vld [vmem:[%s375] ss:$2 sm:$0xff]
    %s377 = scalar_lea.vmem [#allocation3], 48
    %v378 = vld [vmem:[%s377] ss:$2 sm:$0xff]
    %s379 = scalar_lea.vmem [#allocation3], 72
    %v380 = vld [vmem:[%s379] ss:$2 sm:$0xff]
    %s381 = scalar_lea.vmem [#allocation3], 96
    %v382 = vld [vmem:[%s381] ss:$2 sm:$0xff]
    %s383 = scalar_lea.vmem [#allocation3], 120
    %v384 = vld [vmem:[%s383] ss:$2 sm:$0xff]
    %s385 = scalar_lea.vmem [#allocation3], 144
    %v386 = vld [vmem:[%s385] ss:$2 sm:$0xff]
    %s387 = scalar_lea.vmem [#allocation3], 168
    %v388 = vld [vmem:[%s387] ss:$2 sm:$0xff]
    %s389 = scalar_lea.vmem [#allocation3], 192
    %v390 = vld [vmem:[%s389] ss:$2 sm:$0xff]
    %s391 = scalar_lea.vmem [#allocation3], 216
    %v392 = vld [vmem:[%s391] ss:$2 sm:$0xff]
    %s393 = scalar_lea.vmem [#allocation3], 240
    %v394 = vld [vmem:[%s393] ss:$2 sm:$0xff]
    %s395 = scalar_lea.vmem [#allocation3], 264
    %v396 = vld [vmem:[%s395] ss:$2 sm:$0xff]
    %s397 = scalar_lea.vmem [#allocation3], 288
    %v398 = vld [vmem:[%s397] ss:$2 sm:$0xff]
    %s399 = scalar_lea.vmem [#allocation3], 312
    %v400 = vld [vmem:[%s399] ss:$2 sm:$0xff]
    %s401 = scalar_lea.vmem [#allocation3], 336
    %v402 = vld [vmem:[%s401] ss:$2 sm:$0xff]
    %s403 = scalar_lea.vmem [#allocation3], 360
    %v404 = vld [vmem:[%s403] ss:$2 sm:$0xff]
    %s405 = scalar_lea.vmem [#allocation3], 1
    %v406 = vld [vmem:[%s405] ss:$2 sm:$0xff]
    %s407 = scalar_lea.vmem [#allocation3], 25
    %v408 = vld [vmem:[%s407] ss:$2 sm:$0xff]
    %s409 = scalar_lea.vmem [#allocation3], 49
    %v410 = vld [vmem:[%s409] ss:$2 sm:$0xff]
    %s411 = scalar_lea.vmem [#allocation3], 73
    %v412 = vld [vmem:[%s411] ss:$2 sm:$0xff]
    %s413 = scalar_lea.vmem [#allocation3], 97
    %v414 = vld [vmem:[%s413] ss:$2 sm:$0xff]
    %s415 = scalar_lea.vmem [#allocation3], 121
    %v416 = vld [vmem:[%s415] ss:$2 sm:$0xff]
    %s417 = scalar_lea.vmem [#allocation3], 145
    %v418 = vld [vmem:[%s417] ss:$2 sm:$0xff]
    %s419 = scalar_lea.vmem [#allocation3], 169
    %v420 = vld [vmem:[%s419] ss:$2 sm:$0xff]
    %s421 = scalar_lea.vmem [#allocation3], 193
    %v422 = vld [vmem:[%s421] ss:$2 sm:$0xff]
    %s423 = scalar_lea.vmem [#allocation3], 217
    %v424 = vld [vmem:[%s423] ss:$2 sm:$0xff]
    %s425 = scalar_lea.vmem [#allocation3], 241
    %v426 = vld [vmem:[%s425] ss:$2 sm:$0xff]
    %s427 = scalar_lea.vmem [#allocation3], 265
    %v428 = vld [vmem:[%s427] ss:$2 sm:$0xff]
    %s429 = scalar_lea.vmem [#allocation3], 289
    %v430 = vld [vmem:[%s429] ss:$2 sm:$0xff]
    %s431 = scalar_lea.vmem [#allocation3], 313
    %v432 = vld [vmem:[%s431] ss:$2 sm:$0xff]
    %s433 = scalar_lea.vmem [#allocation3], 337
    %v434 = vld [vmem:[%s433] ss:$2 sm:$0xff]
    %s435 = scalar_lea.vmem [#allocation3], 361
    %v436 = vld [vmem:[%s435] ss:$2 sm:$0xff]
    %v437 = vmax.f32 %v374, %v406
    %v438 = vmax.f32 %v376, %v408
    %v439 = vmax.f32 %v378, %v410
    %v440 = vmax.f32 %v380, %v412
    %v441 = vmax.f32 %v382, %v414
    %v442 = vmax.f32 %v384, %v416
    %v443 = vmax.f32 %v386, %v418
    %v444 = vmax.f32 %v388, %v420
    %v445 = vmax.f32 %v390, %v422
    %v446 = vmax.f32 %v392, %v424
    %v447 = vmax.f32 %v394, %v426
    %v448 = vmax.f32 %v396, %v428
    %v449 = vmax.f32 %v398, %v430
    %v450 = vmax.f32 %v400, %v432
    %v451 = vmax.f32 %v402, %v434
    %v452 = vmax.f32 %v404, %v436
    %s453 = scalar_lea.vmem [#allocation3], 2
    %v454 = vld [vmem:[%s453] ss:$2 sm:$0xff]
    %s455 = scalar_lea.vmem [#allocation3], 26
    %v456 = vld [vmem:[%s455] ss:$2 sm:$0xff]
    %s457 = scalar_lea.vmem [#allocation3], 50
    %v458 = vld [vmem:[%s457] ss:$2 sm:$0xff]
    %s459 = scalar_lea.vmem [#allocation3], 74
    %v460 = vld [vmem:[%s459] ss:$2 sm:$0xff]
    %s461 = scalar_lea.vmem [#allocation3], 98
    %v462 = vld [vmem:[%s461] ss:$2 sm:$0xff]
    %s463 = scalar_lea.vmem [#allocation3], 122
    %v464 = vld [vmem:[%s463] ss:$2 sm:$0xff]
    %s465 = scalar_lea.vmem [#allocation3], 146
    %v466 = vld [vmem:[%s465] ss:$2 sm:$0xff]
    %s467 = scalar_lea.vmem [#allocation3], 170
    %v468 = vld [vmem:[%s467] ss:$2 sm:$0xff]
    %s469 = scalar_lea.vmem [#allocation3], 194
    %v470 = vld [vmem:[%s469] ss:$2 sm:$0xff]
    %s471 = scalar_lea.vmem [#allocation3], 218
    %v472 = vld [vmem:[%s471] ss:$2 sm:$0xff]
    %s473 = scalar_lea.vmem [#allocation3], 242
    %v474 = vld [vmem:[%s473] ss:$2 sm:$0xff]
    %s475 = scalar_lea.vmem [#allocation3], 266
    %v476 = vld [vmem:[%s475] ss:$2 sm:$0xff]
    %s477 = scalar_lea.vmem [#allocation3], 290
    %v478 = vld [vmem:[%s477] ss:$2 sm:$0xff]
    %s479 = scalar_lea.vmem [#allocation3], 314
    %v480 = vld [vmem:[%s479] ss:$2 sm:$0xff]
    %s481 = scalar_lea.vmem [#allocation3], 338
    %v482 = vld [vmem:[%s481] ss:$2 sm:$0xff]
    %s483 = scalar_lea.vmem [#allocation3], 362
    %v484 = vld [vmem:[%s483] ss:$2 sm:$0xff]
    %v485 = vmax.f32 %v437, %v454
    %v486 = vmax.f32 %v438, %v456
    %v487 = vmax.f32 %v439, %v458
    %v488 = vmax.f32 %v440, %v460
    %v489 = vmax.f32 %v441, %v462
    %v490 = vmax.f32 %v442, %v464
    %v491 = vmax.f32 %v443, %v466
    %v492 = vmax.f32 %v444, %v468
    %v493 = vmax.f32 %v445, %v470
    %v494 = vmax.f32 %v446, %v472
    %v495 = vmax.f32 %v447, %v474
    %v496 = vmax.f32 %v448, %v476
    %v497 = vmax.f32 %v449, %v478
    %v498 = vmax.f32 %v450, %v480
    %v499 = vmax.f32 %v451, %v482
    %v500 = vmax.f32 %v452, %v484
    %501 = vst.msk [vmem:[#allocation2] sm:$0xff] %vm73, -1e+30
    %502 = vst.msk [vmem:[#allocation2 + $0x120] sm:$0xff] %vm73, -1e+30
    %s503 = scalar_lea.vmem [#allocation2], 144
    %504 = vst.msk [vmem:[%s503] sm:$0xff] %vm73, -1e+30
    %505 = vst.msk [vmem:[%s503 + $0x120] sm:$0xff] %vm73, -1e+30
    %506 = vst.msk [vmem:[%s83] sm:$0xff] %vm73, %v485
    %507 = vst.msk [vmem:[%s83 + $0x10] sm:$0xff] %vm73, %v486
    %508 = vst.msk [vmem:[%s83 + $0x20] sm:$0xff] %vm73, %v487
    %509 = vst.msk [vmem:[%s83 + $0x30] sm:$0xff] %vm73, %v488
    %510 = vst.msk [vmem:[%s83 + $0x40] sm:$0xff] %vm73, %v489
    %511 = vst.msk [vmem:[%s83 + $0x50] sm:$0xff] %vm73, %v490
    %512 = vst.msk [vmem:[%s83 + $0x60] sm:$0xff] %vm73, %v491
    %513 = vst.msk [vmem:[%s83 + $0x70] sm:$0xff] %vm73, %v492
    %514 = vst.msk [vmem:[%s83 + $0x120] sm:$0xff] %vm73, %v493
    %515 = vst.msk [vmem:[%s83 + $0x130] sm:$0xff] %vm73, %v494
    %516 = vst.msk [vmem:[%s83 + $0x140] sm:$0xff] %vm73, %v495
    %517 = vst.msk [vmem:[%s83 + $0x150] sm:$0xff] %vm73, %v496
    %518 = vst.msk [vmem:[%s83 + $0x160] sm:$0xff] %vm73, %v497
    %519 = vst.msk [vmem:[%s83 + $0x170] sm:$0xff] %vm73, %v498
    %520 = vst.msk [vmem:[%s83 + $0x180] sm:$0xff] %vm73, %v499
    %521 = vst.msk [vmem:[%s83 + $0x190] sm:$0xff] %vm73, %v500
    %v522 = vld [vmem:[#allocation2] sm:$0xff]
    %v523 = vld [vmem:[#allocation2 + $0x20] sm:$0xff]
    %v524 = vld [vmem:[#allocation2 + $0x40] sm:$0xff]
    %v525 = vld [vmem:[#allocation2 + $0x60] sm:$0xff]
    %v526 = vld [vmem:[#allocation2 + $0x120] sm:$0xff]
    %v527 = vld [vmem:[#allocation2 + $0x140] sm:$0xff]
    %v528 = vld [vmem:[#allocation2 + $0x160] sm:$0xff]
    %v529 = vld [vmem:[#allocation2 + $0x180] sm:$0xff]
    %v530 = vld [vmem:[%s83] sm:$0xff]
    %v531 = vld [vmem:[%s83 + $0x20] sm:$0xff]
    %v532 = vld [vmem:[%s83 + $0x40] sm:$0xff]
    %v533 = vld [vmem:[%s83 + $0x60] sm:$0xff]
    %v534 = vld [vmem:[%s83 + $0x120] sm:$0xff]
    %v535 = vld [vmem:[%s83 + $0x140] sm:$0xff]
    %v536 = vld [vmem:[%s83 + $0x160] sm:$0xff]
    %v537 = vld [vmem:[%s83 + $0x180] sm:$0xff]
    %v538 = vmax.f32 %v522, %v530
    %v539 = vmax.f32 %v523, %v531
    %v540 = vmax.f32 %v524, %v532
    %v541 = vmax.f32 %v525, %v533
    %v542 = vmax.f32 %v526, %v534
    %v543 = vmax.f32 %v527, %v535
    %v544 = vmax.f32 %v528, %v536
    %v545 = vmax.f32 %v529, %v537
    %v546 = vld [vmem:[%s244] sm:$0xff]
    %v547 = vld [vmem:[%s244 + $0x20] sm:$0xff]
    %v548 = vld [vmem:[%s244 + $0x40] sm:$0xff]
    %v549 = vld [vmem:[%s244 + $0x60] sm:$0xff]
    %v550 = vld [vmem:[%s244 + $0x120] sm:$0xff]
    %v551 = vld [vmem:[%s244 + $0x140] sm:$0xff]
    %v552 = vld [vmem:[%s244 + $0x160] sm:$0xff]
    %v553 = vld [vmem:[%s244 + $0x180] sm:$0xff]
    %v554 = vmax.f32 %v538, %v546
    %v555 = vmax.f32 %v539, %v547
    %v556 = vmax.f32 %v540, %v548
    %v557 = vmax.f32 %v541, %v549
    %v558 = vmax.f32 %v542, %v550
    %v559 = vmax.f32 %v543, %v551
    %v560 = vmax.f32 %v544, %v552
    %v561 = vmax.f32 %v545, %v553
    %562 = vst.msk [vmem:[#allocation3] sm:$0x1] %vm309, -1e+30
    %563 = vst.msk [vmem:[#allocation3 + $0x18] sm:$0x1] %vm309, -1e+30
    %564 = vst.msk [vmem:[#allocation3 + $0x30] sm:$0x1] %vm309, -1e+30
    %565 = vst.msk [vmem:[#allocation3 + $0x48] sm:$0x1] %vm309, -1e+30
    %566 = vst.msk [vmem:[#allocation3 + $0xc0] sm:$0x1] %vm309, -1e+30
    %567 = vst.msk [vmem:[#allocation3 + $0xd8] sm:$0x1] %vm309, -1e+30
    %568 = vst.msk [vmem:[#allocation3 + $0xf0] sm:$0x1] %vm309, -1e+30
    %569 = vst.msk [vmem:[#allocation3 + $0x108] sm:$0x1] %vm309, -1e+30
    %570 = vst.msk [vmem:[#allocation3 + $0x9] sm:$0x1] %vm309, -1e+30
    %571 = vst.msk [vmem:[#allocation3 + $0x21] sm:$0x1] %vm309, -1e+30
    %572 = vst.msk [vmem:[#allocation3 + $0x39] sm:$0x1] %vm309, -1e+30
    %573 = vst.msk [vmem:[#allocation3 + $0x51] sm:$0x1] %vm309, -1e+30
    %574 = vst.msk [vmem:[#allocation3 + $0xc9] sm:$0x1] %vm309, -1e+30
    %575 = vst.msk [vmem:[#allocation3 + $0xe1] sm:$0x1] %vm309, -1e+30
    %576 = vst.msk [vmem:[#allocation3 + $0xf9] sm:$0x1] %vm309, -1e+30
    %577 = vst.msk [vmem:[#allocation3 + $0x111] sm:$0x1] %vm309, -1e+30
    %578 = vst.msk [vmem:[#allocation3 + $0x1] sm:$0xff] %vm73, %v554
    %579 = vst.msk [vmem:[#allocation3 + $0x19] sm:$0xff] %vm73, %v555
    %580 = vst.msk [vmem:[#allocation3 + $0x31] sm:$0xff] %vm73, %v556
    %581 = vst.msk [vmem:[#allocation3 + $0x49] sm:$0xff] %vm73, %v557
    %582 = vst.msk [vmem:[#allocation3 + $0xc1] sm:$0xff] %vm73, %v558
    %583 = vst.msk [vmem:[#allocation3 + $0xd9] sm:$0xff] %vm73, %v559
    %584 = vst.msk [vmem:[#allocation3 + $0xf1] sm:$0xff] %vm73, %v560
    %585 = vst.msk [vmem:[#allocation3 + $0x109] sm:$0xff] %vm73, %v561
    %v586 = vld [vmem:[#allocation3] ss:$2 sm:$0xf]
    %v587 = vld [vmem:[%s375] ss:$2 sm:$0xf]
    %v588 = vld [vmem:[%s377] ss:$2 sm:$0xf]
    %v589 = vld [vmem:[%s379] ss:$2 sm:$0xf]
    %v590 = vld [vmem:[%s389] ss:$2 sm:$0xf]
    %v591 = vld [vmem:[%s391] ss:$2 sm:$0xf]
    %v592 = vld [vmem:[%s393] ss:$2 sm:$0xf]
    %v593 = vld [vmem:[%s395] ss:$2 sm:$0xf]
    %v594 = vld [vmem:[%s405] ss:$2 sm:$0xf]
    %v595 = vld [vmem:[%s407] ss:$2 sm:$0xf]
    %v596 = vld [vmem:[%s409] ss:$2 sm:$0xf]
    %v597 = vld [vmem:[%s411] ss:$2 sm:$0xf]
    %v598 = vld [vmem:[%s421] ss:$2 sm:$0xf]
    %v599 = vld [vmem:[%s423] ss:$2 sm:$0xf]
    %v600 = vld [vmem:[%s425] ss:$2 sm:$0xf]
    %v601 = vld [vmem:[%s427] ss:$2 sm:$0xf]
    %v602 = vmax.f32 %v586, %v594
    %v603 = vmax.f32 %v587, %v595
    %v604 = vmax.f32 %v588, %v596
    %v605 = vmax.f32 %v589, %v597
    %v606 = vmax.f32 %v590, %v598
    %v607 = vmax.f32 %v591, %v599
    %v608 = vmax.f32 %v592, %v600
    %v609 = vmax.f32 %v593, %v601
    %v610 = vld [vmem:[%s453] ss:$2 sm:$0xf]
    %v611 = vld [vmem:[%s455] ss:$2 sm:$0xf]
    %v612 = vld [vmem:[%s457] ss:$2 sm:$0xf]
    %v613 = vld [vmem:[%s459] ss:$2 sm:$0xf]
    %v614 = vld [vmem:[%s469] ss:$2 sm:$0xf]
    %v615 = vld [vmem:[%s471] ss:$2 sm:$0xf]
    %v616 = vld [vmem:[%s473] ss:$2 sm:$0xf]
    %v617 = vld [vmem:[%s475] ss:$2 sm:$0xf]
    %v618 = vmax.f32 %v602, %v610
    %v619 = vmax.f32 %v603, %v611
    %v620 = vmax.f32 %v604, %v612
    %v621 = vmax.f32 %v605, %v613
    %v622 = vmax.f32 %v606, %v614
    %v623 = vmax.f32 %v607, %v615
    %v624 = vmax.f32 %v608, %v616
    %v625 = vmax.f32 %v609, %v617
    %vm626 = vcmp.gt.f32.partialorder %v618, 0.0
    %vm627 = vcmp.gt.f32.partialorder %v619, 0.0
    %vm628 = vcmp.gt.f32.partialorder %v620, 0.0
    %vm629 = vcmp.gt.f32.partialorder %v621, 0.0
    %vm630 = vcmp.gt.f32.partialorder %v622, 0.0
    %vm631 = vcmp.gt.f32.partialorder %v623, 0.0
    %vm632 = vcmp.gt.f32.partialorder %v624, 0.0
    %vm633 = vcmp.gt.f32.partialorder %v625, 0.0
    %v634 = vsel %vm626, 1, 0
    %v635 = vsel %vm627, 1, 0
    %v636 = vsel %vm628, 1, 0
    %v637 = vsel %vm629, 1, 0
    %v638 = vsel %vm630, 1, 0
    %v639 = vsel %vm631, 1, 0
    %v640 = vsel %vm632, 1, 0
    %v641 = vsel %vm633, 1, 0
    %642 = vset.pattern.permute.xlu0 4
    %643 = vperm.xlu0 %642, %v634
    %v644 = vpop.permute.xlu0 %643
    %645 = vset.pattern.permute.xlu0 4
    %646 = vperm.xlu0 %645, %v635
    %v647 = vpop.permute.xlu0 %646
    %648 = vset.pattern.permute.xlu0 4
    %649 = vperm.xlu0 %648, %v636
    %v650 = vpop.permute.xlu0 %649
    %651 = vset.pattern.permute.xlu0 4
    %652 = vperm.xlu0 %651, %v637
    %v653 = vpop.permute.xlu0 %652
    %654 = vset.pattern.permute.xlu0 4
    %655 = vperm.xlu0 %654, %v638
    %v656 = vpop.permute.xlu0 %655
    %657 = vset.pattern.permute.xlu0 4
    %658 = vperm.xlu0 %657, %v639
    %v659 = vpop.permute.xlu0 %658
    %660 = vset.pattern.permute.xlu0 4
    %661 = vperm.xlu0 %660, %v640
    %v662 = vpop.permute.xlu0 %661
    %663 = vset.pattern.permute.xlu0 4
    %664 = vperm.xlu0 %663, %v641
    %v665 = vpop.permute.xlu0 %664
    %vm666 = vcmp.eq.s32.totalorder %v644, 1
    %vm667 = vcmp.eq.s32.totalorder %v647, 1
    %vm668 = vcmp.eq.s32.totalorder %v650, 1
    %vm669 = vcmp.eq.s32.totalorder %v653, 1
    %vm670 = vcmp.eq.s32.totalorder %v656, 1
    %vm671 = vcmp.eq.s32.totalorder %v659, 1
    %vm672 = vcmp.eq.s32.totalorder %v662, 1
    %vm673 = vcmp.eq.s32.totalorder %v665, 1
    %v674 = vsel %vm666, %v618, 0.0
    %v675 = vsel %vm667, %v619, 0.0
    %v676 = vsel %vm668, %v620, 0.0
    %v677 = vsel %vm669, %v621, 0.0
    %v678 = vsel %vm670, %v622, 0.0
    %v679 = vsel %vm671, %v623, 0.0
    %v680 = vsel %vm672, %v624, 0.0
    %v681 = vsel %vm673, %v625, 0.0
    %vm682 = vcmask 27648
    %683 = vst.msk [vmem:[#allocation4] sm:$0xf] %vm682, %v674
    %684 = vst.msk [vmem:[#allocation4 + $0x4] sm:$0xf] %vm682, %v675
    %685 = vst.msk [vmem:[#allocation4 + $0x8] sm:$0xf] %vm682, %v676
    %686 = vst.msk [vmem:[#allocation4 + $0xc] sm:$0xf] %vm682, %v677
    %687 = vst.msk [vmem:[#allocation4 + $0x10] sm:$0xf] %vm682, %v678
    %688 = vst.msk [vmem:[#allocation4 + $0x14] sm:$0xf] %vm682, %v679
    %689 = vst.msk [vmem:[#allocation4 + $0x18] sm:$0xf] %vm682, %v680
    %690 = vst.msk [vmem:[#allocation4 + $0x1c] sm:$0xf] %vm682, %v681
    // Predicated region
    $region6: #{tpu_custom_call.1} parent=1 // pred_check
      _
    $region7: #{tpu_custom_call.1} parent=1 // pred_check_branch
      %692 = sbr.rel (0) target = $region9
    $region8: #{tpu_custom_call.1} parent=1 // pred_region
      %694 = vsyncadd [#allocation5], 0
      %s695 = sshll.u32 [#allocation4], 4
      %s696 = int_to_ptr.vmem [resolvable:$true] %s695
      %s697 = sshll.u32 %s1, 4
      %s698 = int_to_ptr.hbm [resolvable:$true] %s697
      %703 = dma.vmem_to_hbm [thread:$0]  %s696, 512, %s698, [#allocation5], 64, 64, 4
    $region9: #{tpu_custom_call.1} parent=1 // pred_fallthru
      _
    // Predicated region
    $region10: #{tpu_custom_call.1} parent=1 // pred_check
      _
    $region11: #{tpu_custom_call.1} parent=1 // pred_check_branch
      %705 = sbr.rel (0) target = $region13
    $region12: #{tpu_custom_call.1} parent=1 // pred_region
      %707 = dma.done [#allocation5], 512
    $region13: #{tpu_custom_call.1} parent=1 // pred_fallthru
      _
    %708 = vsyncpa [#allocation5], 1

</llo_original>
